<compile_context>
chip_gen: v7x
topology: tpu7x:2x2x1
jax: 0.10.0
libtpu: 0.0.40
codegen_flags: <defaults>
</compile_context>

<pallas_src>
import jax
import jax.numpy as jnp
from jax.experimental import pallas as pl
from jax.experimental.pallas import tpu as pltpu

D_IN, H, H2, LATENT = 32, 50, 12, 3
BN_EPS = 1e-5
PAD = 128       # padded feature width (lane aligned -> unmasked stores)
HALF = 64       # lane offset of the mu/logvar half in the merged output slab
N_FUSED = 10    # 11 Linear layers with fc21/fc22 fused into one matmul


def _round_up(n, m):
    return ((n + m - 1) // m) * m


# --------------------------------------------------------------------------
# Kernel
# --------------------------------------------------------------------------
def _autoencoder_kernel(x_ref, w_ref, b_ref, out_ref):
    # x_ref:   (TILE_B, D_IN) f32
    # w_ref:   (N_FUSED, PAD, PAD) bf16 zero-padded folded weights, (in, out)
    # b_ref:   (N_FUSED, 1, PAD)   f32  zero-padded folded biases
    # out_ref: (TILE_B, PAD) f32 merged slab:
    #            lanes [0:D_IN)              -> recon
    #            lanes [HALF:HALF+LATENT)    -> mu
    #            lanes [HALF+LATENT:HALF+2L) -> logvar
    def dense(h, l, relu):
        # bf16 MXU matmul, f32 accumulation; f32 bias-add / ReLU epilogue.
        y = jnp.dot(h.astype(jnp.bfloat16), w_ref[l],
                    preferred_element_type=jnp.float32) + b_ref[l]
        return jnp.maximum(y, 0.0) if relu else y

    # layer 0 (linear1 + lin_bn1 + relu): contract over only the D_IN real
    # rows of w[0] (the x tile already has just D_IN lanes).
    x = x_ref[...].astype(jnp.bfloat16)
    w0 = w_ref[0][:D_IN, :]
    h = jnp.maximum(
        jnp.dot(x, w0, preferred_element_type=jnp.float32) + b_ref[0], 0.0)

    h = dense(h, 1, True)       # linear2 + lin_bn2 + relu
    h = dense(h, 2, True)       # linear3 + lin_bn3 + relu
    h = dense(h, 3, True)       # fc1     + bn1     + relu

    # fused fc21|fc22: lanes [0:LATENT) = mu, [LATENT:2*LATENT) = logvar
    y = dense(h, 4, False)

    # decoder with z = mu (eval-mode reparameterize).  Padded fc3 weight rows
    # >= LATENT are zero, so the logvar / padding lanes of `y` contribute 0.
    d = dense(y, 5, True)       # fc3     + fc_bn3  + relu
    d = dense(d, 6, True)       # fc4     + fc_bn4  + relu
    d = dense(d, 7, True)       # linear4 + lin_bn4 + relu
    d = dense(d, 8, True)       # linear5 + lin_bn5 + relu
    recon = dense(d, 9, False)  # linear6 + lin_bn6 (no relu)

    # Merge into one lane-dense 128-wide slab (full-width unmasked store):
    # [recon lanes 0:64 | mu/logvar lanes 0:64].
    out_ref[...] = jnp.concatenate([recon[:, :HALF], y[:, :HALF]], axis=-1)


# --------------------------------------------------------------------------
# Wrapper
# --------------------------------------------------------------------------
def pack_params(params):
    """Pack 11 folded (W (in,out) f32, b (1,out) f32) into two padded slabs.

    Returns (w_slab (N_FUSED, PAD, PAD) bf16, b_slab (N_FUSED, 1, PAD) f32).
    fc21 (orig idx 4) and fc22 (orig idx 5) are fused into slab layer 4.
    """
    w_slab = jnp.zeros((N_FUSED, PAD, PAD), jnp.float32)
    b_slab = jnp.zeros((N_FUSED, 1, PAD), jnp.float32)
    # original layer index -> fused slab index (fc21/fc22 handled below)
    fused_idx = [0, 1, 2, 3, None, None, 5, 6, 7, 8, 9]
    for orig, fl in enumerate(fused_idx):
        if fl is None:
            continue
        w, b = params[orig]
        fi, fo = w.shape
        w_slab = w_slab.at[fl, :fi, :fo].set(w)
        b_slab = b_slab.at[fl, 0, :fo].set(b.reshape(-1))
    w21, b21 = params[4]
    w22, b22 = params[5]
    w_slab = w_slab.at[4, :LATENT, :LATENT].set(w21)
    w_slab = w_slab.at[4, :LATENT, LATENT:2 * LATENT].set(w22)
    b_slab = b_slab.at[4, 0, :LATENT].set(b21.reshape(-1))
    b_slab = b_slab.at[4, 0, LATENT:2 * LATENT].set(b22.reshape(-1))
    return w_slab.astype(jnp.bfloat16), b_slab


def _pick_tile_b(batch, cap=1024):
    """Tile rows: multiple of 16 (bf16 sublanes), >=2 tiles when possible
    (v7x two TensorCores), minimal batch padding, capped for VMEM headroom."""
    b16 = _round_up(max(batch, 1), 16)
    n_tiles = max(2 if b16 > 16 else 1, pl.cdiv(b16, cap))
    return _round_up(pl.cdiv(b16, n_tiles), 16)


def autoencoder_forward(x, params, tile_b=None):
    """x: (B, D_IN) f32; params: list of 11 (W_eff (in,out), b_eff (1,out))."""
    batch = x.shape[0]
    w_slab, b_slab = pack_params(params)

    if tile_b is None:
        tile_b = _pick_tile_b(batch)
    padded_batch = _round_up(batch, tile_b)
    if padded_batch != batch:
        x = jnp.pad(x, ((0, padded_batch - batch), (0, 0)))
    n_tiles = pl.cdiv(padded_batch, tile_b)

    out_pad = pl.pallas_call(
        _autoencoder_kernel,
        out_shape=jax.ShapeDtypeStruct((padded_batch, PAD), jnp.float32),
        grid=(n_tiles,),
        in_specs=[
            pl.BlockSpec((tile_b, D_IN), lambda i: (i, 0)),
            # constant index_map -> slabs stay VMEM-resident across tiles
            pl.BlockSpec((N_FUSED, PAD, PAD), lambda i: (0, 0, 0)),
            pl.BlockSpec((N_FUSED, 1, PAD), lambda i: (0, 0, 0)),
        ],
        out_specs=pl.BlockSpec((tile_b, PAD), lambda i: (i, 0)),
        compiler_params=pltpu.CompilerParams(
            dimension_semantics=("parallel",),
            vmem_limit_bytes=32 * 1024 * 1024,
        ),
    )(x, w_slab, b_slab)

    recon = out_pad[:batch, :D_IN]
    mu = out_pad[:batch, HALF:HALF + LATENT]
    logvar = out_pad[:batch, HALF + LATENT:HALF + 2 * LATENT]
    return recon, mu, logvar


# --------------------------------------------------------------------------
# Parameter construction (BatchNorm eval-mode folded into W, b)
# --------------------------------------------------------------------------
def init_params(key):
    layer_dims = [
        (D_IN, H, True),          # linear1 + lin_bn1
        (H, H2, True),            # linear2 + lin_bn2
        (H2, H2, True),           # linear3 + lin_bn3
        (H2, LATENT, True),       # fc1     + bn1
        (LATENT, LATENT, False),  # fc21
        (LATENT, LATENT, False),  # fc22
        (LATENT, LATENT, True),   # fc3     + fc_bn3
        (LATENT, H2, True),       # fc4     + fc_bn4
        (H2, H2, True),           # linear4 + lin_bn4
        (H2, H, True),            # linear5 + lin_bn5
        (H, D_IN, True),          # linear6 + lin_bn6
    ]
    params = []
    for fan_in, fan_out, has_bn in layer_dims:
        key, kw, kb, kg, kbeta, km, kv = jax.random.split(key, 7)
        bound = 1.0 / jnp.sqrt(jnp.float32(fan_in))
        w = jax.random.uniform(kw, (fan_in, fan_out), jnp.float32, -bound, bound)
        b = jax.random.uniform(kb, (fan_out,), jnp.float32, -bound, bound)
        if has_bn:
            gamma = 1.0 + 0.1 * jax.random.normal(kg, (fan_out,), jnp.float32)
            beta = 0.1 * jax.random.normal(kbeta, (fan_out,), jnp.float32)
            rmean = 0.1 * jax.random.normal(km, (fan_out,), jnp.float32)
            rvar = jnp.abs(1.0 + 0.1 * jax.random.normal(kv, (fan_out,), jnp.float32))
            s = gamma / jnp.sqrt(rvar + BN_EPS)
            w = w * s[None, :]
            b = b * s + beta - rmean * s
        params.append((w, b.reshape(1, fan_out)))
    return params


def reference_forward(x, params, matmul_dtype=jnp.float32):
    """Pure-JAX reference mirroring the folded eval-mode forward.

    matmul_dtype=jnp.bfloat16 mirrors the kernel's MXU precision (bf16 inputs,
    f32 accumulation, f32 epilogue); jnp.float32 is the full-precision check.
    """
    def dense(h, i, relu):
        w, b = params[i]
        y = jnp.dot(h.astype(matmul_dtype), w.astype(matmul_dtype),
                    preferred_element_type=jnp.float32) + b
        return jnp.maximum(y, 0.0) if relu else y

    h = x
    for i in range(4):
        h = dense(h, i, True)
    mu = dense(h, 4, False)
    logvar = dense(h, 5, False)
    d = mu
    for i in range(6, 10):
        d = dense(d, i, True)
    recon = dense(d, 10, False)
    return recon, mu, logvar


if __name__ == "__main__":
    key = jax.random.PRNGKey(0)
    kx, kp = jax.random.split(key)
    batch = 16
    x = jax.random.normal(kx, (batch, D_IN), jnp.float32)
    params = init_params(kp)

    recon, mu, logvar = autoencoder_forward(x, params)
    jax.block_until_ready((recon, mu, logvar))

    # Tight check vs a reference that mirrors the kernel's bf16-matmul /
    # f32-accumulate precision.
    r_bf, m_bf, lv_bf = reference_forward(x, params, matmul_dtype=jnp.bfloat16)
    assert jnp.allclose(recon, r_bf, atol=1e-3, rtol=1e-3)
    assert jnp.allclose(mu, m_bf, atol=1e-3, rtol=1e-3)
    assert jnp.allclose(logvar, lv_bf, atol=1e-3, rtol=1e-3)

    # Loose semantic check vs the full-f32 forward (bf16 matmul rounding).
    r_f, m_f, lv_f = reference_forward(x, params, matmul_dtype=jnp.float32)
    assert jnp.allclose(recon, r_f, atol=1e-1, rtol=1e-1)
    assert jnp.allclose(mu, m_f, atol=1e-1, rtol=1e-1)
    assert jnp.allclose(logvar, lv_f, atol=1e-1, rtol=1e-1)

    print("KERNEL_OK")
</pallas_src>

<mosaic_0001>
module attributes {stable_mosaic.version = 11 : i64} {
  func.func @_autoencoder_kernel(%arg0: i32, %arg1: memref<16x32xf32, #tpu.memory_space<vmem>>, %arg2: memref<10x128x128xbf16, #tpu.memory_space<vmem>>, %arg3: memref<10x1x128xf32, #tpu.memory_space<vmem>>, %arg4: memref<16x128xf32, #tpu.memory_space<vmem>>) attributes {dimension_semantics = [#tpu.dimension_semantics<parallel>], iteration_bounds = array<i64: 1>, scalar_prefetch = 0 : i64, scratch_operands = 0 : i64, tpu.core_type = #tpu.core_type<tc>, window_params = [{transform_indices = @transform_0, window_bounds = array<i64: 16, 32>}, {pipeline_mode = #tpu.pipeline_mode<synchronous>, transform_indices = @transform_1, window_bounds = array<i64: 10, 128, 128>}, {pipeline_mode = #tpu.pipeline_mode<synchronous>, transform_indices = @transform_2, window_bounds = array<i64: 10, 1, 128>}, {transform_indices = @transform_3, window_bounds = array<i64: 16, 128>}]} {
    %c0 = arith.constant 0 : index
    %c0_0 = arith.constant 0 : index
    %0 = vector.load %arg1[%c0, %c0_0] : memref<16x32xf32, #tpu.memory_space<vmem>>, vector<16x32xf32>
    %1 = arith.truncf %0 : vector<16x32xf32> to vector<16x32xbf16>
    %c0_1 = arith.constant 0 : index
    %c0_2 = arith.constant 0 : index
    %c0_3 = arith.constant 0 : index
    %2 = vector.load %arg2[%c0_1, %c0_2, %c0_3] : memref<10x128x128xbf16, #tpu.memory_space<vmem>>, vector<1x128x128xbf16>
    %3 = vector.shape_cast %2 : vector<1x128x128xbf16> to vector<128x128xbf16>
    %4 = vector.extract_strided_slice %3 {offsets = [0, 0], sizes = [32, 128], strides = [1, 1]} : vector<128x128xbf16> to vector<32x128xbf16>
    %cst = arith.constant dense<0.000000e+00> : vector<16x128xf32>
    %5 = tpu.matmul %1, %4, %cst {dimension_numbers = #tpu.dot_dimension_numbers<[1], [0], [0], [1], [0, 0, 1, 1], [], []>} : vector<16x32xbf16>, vector<32x128xbf16>, vector<16x128xf32> -> vector<16x128xf32>
    %c0_4 = arith.constant 0 : index
    %c0_5 = arith.constant 0 : index
    %c0_6 = arith.constant 0 : index
    %6 = vector.load %arg3[%c0_4, %c0_5, %c0_6] : memref<10x1x128xf32, #tpu.memory_space<vmem>>, vector<1x1x128xf32>
    %7 = vector.shape_cast %6 : vector<1x1x128xf32> to vector<1x128xf32>
    %8 = vector.broadcast %7 : vector<1x128xf32> to vector<16x128xf32>
    %9 = arith.addf %5, %8 : vector<16x128xf32>
    %cst_7 = arith.constant 0.000000e+00 : f32
    %10 = vector.broadcast %cst_7 : f32 to vector<16x128xf32>
    %11 = arith.maximumf %9, %10 : vector<16x128xf32>
    %12 = arith.truncf %11 : vector<16x128xf32> to vector<16x128xbf16>
    %c1 = arith.constant 1 : index
    %c0_8 = arith.constant 0 : index
    %c0_9 = arith.constant 0 : index
    %13 = vector.load %arg2[%c1, %c0_8, %c0_9] : memref<10x128x128xbf16, #tpu.memory_space<vmem>>, vector<1x128x128xbf16>
    %14 = vector.shape_cast %13 : vector<1x128x128xbf16> to vector<128x128xbf16>
    %cst_10 = arith.constant dense<0.000000e+00> : vector<16x128xf32>
    %15 = tpu.matmul %12, %14, %cst_10 {dimension_numbers = #tpu.dot_dimension_numbers<[1], [0], [0], [1], [0, 0, 1, 1], [], []>} : vector<16x128xbf16>, vector<128x128xbf16>, vector<16x128xf32> -> vector<16x128xf32>
    %c1_11 = arith.constant 1 : index
    %c0_12 = arith.constant 0 : index
    %c0_13 = arith.constant 0 : index
    %16 = vector.load %arg3[%c1_11, %c0_12, %c0_13] : memref<10x1x128xf32, #tpu.memory_space<vmem>>, vector<1x1x128xf32>
    %17 = vector.shape_cast %16 : vector<1x1x128xf32> to vector<1x128xf32>
    %18 = vector.broadcast %17 : vector<1x128xf32> to vector<16x128xf32>
    %19 = arith.addf %15, %18 : vector<16x128xf32>
    %cst_14 = arith.constant 0.000000e+00 : f32
    %20 = vector.broadcast %cst_14 : f32 to vector<16x128xf32>
    %21 = arith.maximumf %19, %20 : vector<16x128xf32>
    %22 = arith.truncf %21 : vector<16x128xf32> to vector<16x128xbf16>
    %c2 = arith.constant 2 : index
    %c0_15 = arith.constant 0 : index
    %c0_16 = arith.constant 0 : index
    %23 = vector.load %arg2[%c2, %c0_15, %c0_16] : memref<10x128x128xbf16, #tpu.memory_space<vmem>>, vector<1x128x128xbf16>
    %24 = vector.shape_cast %23 : vector<1x128x128xbf16> to vector<128x128xbf16>
    %cst_17 = arith.constant dense<0.000000e+00> : vector<16x128xf32>
    %25 = tpu.matmul %22, %24, %cst_17 {dimension_numbers = #tpu.dot_dimension_numbers<[1], [0], [0], [1], [0, 0, 1, 1], [], []>} : vector<16x128xbf16>, vector<128x128xbf16>, vector<16x128xf32> -> vector<16x128xf32>
    %c2_18 = arith.constant 2 : index
    %c0_19 = arith.constant 0 : index
    %c0_20 = arith.constant 0 : index
    %26 = vector.load %arg3[%c2_18, %c0_19, %c0_20] : memref<10x1x128xf32, #tpu.memory_space<vmem>>, vector<1x1x128xf32>
    %27 = vector.shape_cast %26 : vector<1x1x128xf32> to vector<1x128xf32>
    %28 = vector.broadcast %27 : vector<1x128xf32> to vector<16x128xf32>
    %29 = arith.addf %25, %28 : vector<16x128xf32>
    %cst_21 = arith.constant 0.000000e+00 : f32
    %30 = vector.broadcast %cst_21 : f32 to vector<16x128xf32>
    %31 = arith.maximumf %29, %30 : vector<16x128xf32>
    %32 = arith.truncf %31 : vector<16x128xf32> to vector<16x128xbf16>
    %c3 = arith.constant 3 : index
    %c0_22 = arith.constant 0 : index
    %c0_23 = arith.constant 0 : index
    %33 = vector.load %arg2[%c3, %c0_22, %c0_23] : memref<10x128x128xbf16, #tpu.memory_space<vmem>>, vector<1x128x128xbf16>
    %34 = vector.shape_cast %33 : vector<1x128x128xbf16> to vector<128x128xbf16>
    %cst_24 = arith.constant dense<0.000000e+00> : vector<16x128xf32>
    %35 = tpu.matmul %32, %34, %cst_24 {dimension_numbers = #tpu.dot_dimension_numbers<[1], [0], [0], [1], [0, 0, 1, 1], [], []>} : vector<16x128xbf16>, vector<128x128xbf16>, vector<16x128xf32> -> vector<16x128xf32>
    %c3_25 = arith.constant 3 : index
    %c0_26 = arith.constant 0 : index
    %c0_27 = arith.constant 0 : index
    %36 = vector.load %arg3[%c3_25, %c0_26, %c0_27] : memref<10x1x128xf32, #tpu.memory_space<vmem>>, vector<1x1x128xf32>
    %37 = vector.shape_cast %36 : vector<1x1x128xf32> to vector<1x128xf32>
    %38 = vector.broadcast %37 : vector<1x128xf32> to vector<16x128xf32>
    %39 = arith.addf %35, %38 : vector<16x128xf32>
    %cst_28 = arith.constant 0.000000e+00 : f32
    %40 = vector.broadcast %cst_28 : f32 to vector<16x128xf32>
    %41 = arith.maximumf %39, %40 : vector<16x128xf32>
    %42 = arith.truncf %41 : vector<16x128xf32> to vector<16x128xbf16>
    %c4 = arith.constant 4 : index
    %c0_29 = arith.constant 0 : index
    %c0_30 = arith.constant 0 : index
    %43 = vector.load %arg2[%c4, %c0_29, %c0_30] : memref<10x128x128xbf16, #tpu.memory_space<vmem>>, vector<1x128x128xbf16>
    %44 = vector.shape_cast %43 : vector<1x128x128xbf16> to vector<128x128xbf16>
    %cst_31 = arith.constant dense<0.000000e+00> : vector<16x128xf32>
    %45 = tpu.matmul %42, %44, %cst_31 {dimension_numbers = #tpu.dot_dimension_numbers<[1], [0], [0], [1], [0, 0, 1, 1], [], []>} : vector<16x128xbf16>, vector<128x128xbf16>, vector<16x128xf32> -> vector<16x128xf32>
    %c4_32 = arith.constant 4 : index
    %c0_33 = arith.constant 0 : index
    %c0_34 = arith.constant 0 : index
    %46 = vector.load %arg3[%c4_32, %c0_33, %c0_34] : memref<10x1x128xf32, #tpu.memory_space<vmem>>, vector<1x1x128xf32>
    %47 = vector.shape_cast %46 : vector<1x1x128xf32> to vector<1x128xf32>
    %48 = vector.broadcast %47 : vector<1x128xf32> to vector<16x128xf32>
    %49 = arith.addf %45, %48 : vector<16x128xf32>
    %50 = arith.truncf %49 : vector<16x128xf32> to vector<16x128xbf16>
    %c5 = arith.constant 5 : index
    %c0_35 = arith.constant 0 : index
    %c0_36 = arith.constant 0 : index
    %51 = vector.load %arg2[%c5, %c0_35, %c0_36] : memref<10x128x128xbf16, #tpu.memory_space<vmem>>, vector<1x128x128xbf16>
    %52 = vector.shape_cast %51 : vector<1x128x128xbf16> to vector<128x128xbf16>
    %cst_37 = arith.constant dense<0.000000e+00> : vector<16x128xf32>
    %53 = tpu.matmul %50, %52, %cst_37 {dimension_numbers = #tpu.dot_dimension_numbers<[1], [0], [0], [1], [0, 0, 1, 1], [], []>} : vector<16x128xbf16>, vector<128x128xbf16>, vector<16x128xf32> -> vector<16x128xf32>
    %c5_38 = arith.constant 5 : index
    %c0_39 = arith.constant 0 : index
    %c0_40 = arith.constant 0 : index
    %54 = vector.load %arg3[%c5_38, %c0_39, %c0_40] : memref<10x1x128xf32, #tpu.memory_space<vmem>>, vector<1x1x128xf32>
    %55 = vector.shape_cast %54 : vector<1x1x128xf32> to vector<1x128xf32>
    %56 = vector.broadcast %55 : vector<1x128xf32> to vector<16x128xf32>
    %57 = arith.addf %53, %56 : vector<16x128xf32>
    %cst_41 = arith.constant 0.000000e+00 : f32
    %58 = vector.broadcast %cst_41 : f32 to vector<16x128xf32>
    %59 = arith.maximumf %57, %58 : vector<16x128xf32>
    %60 = arith.truncf %59 : vector<16x128xf32> to vector<16x128xbf16>
    %c6 = arith.constant 6 : index
    %c0_42 = arith.constant 0 : index
    %c0_43 = arith.constant 0 : index
    %61 = vector.load %arg2[%c6, %c0_42, %c0_43] : memref<10x128x128xbf16, #tpu.memory_space<vmem>>, vector<1x128x128xbf16>
    %62 = vector.shape_cast %61 : vector<1x128x128xbf16> to vector<128x128xbf16>
    %cst_44 = arith.constant dense<0.000000e+00> : vector<16x128xf32>
    %63 = tpu.matmul %60, %62, %cst_44 {dimension_numbers = #tpu.dot_dimension_numbers<[1], [0], [0], [1], [0, 0, 1, 1], [], []>} : vector<16x128xbf16>, vector<128x128xbf16>, vector<16x128xf32> -> vector<16x128xf32>
    %c6_45 = arith.constant 6 : index
    %c0_46 = arith.constant 0 : index
    %c0_47 = arith.constant 0 : index
    %64 = vector.load %arg3[%c6_45, %c0_46, %c0_47] : memref<10x1x128xf32, #tpu.memory_space<vmem>>, vector<1x1x128xf32>
    %65 = vector.shape_cast %64 : vector<1x1x128xf32> to vector<1x128xf32>
    %66 = vector.broadcast %65 : vector<1x128xf32> to vector<16x128xf32>
    %67 = arith.addf %63, %66 : vector<16x128xf32>
    %cst_48 = arith.constant 0.000000e+00 : f32
    %68 = vector.broadcast %cst_48 : f32 to vector<16x128xf32>
    %69 = arith.maximumf %67, %68 : vector<16x128xf32>
    %70 = arith.truncf %69 : vector<16x128xf32> to vector<16x128xbf16>
    %c7 = arith.constant 7 : index
    %c0_49 = arith.constant 0 : index
    %c0_50 = arith.constant 0 : index
    %71 = vector.load %arg2[%c7, %c0_49, %c0_50] : memref<10x128x128xbf16, #tpu.memory_space<vmem>>, vector<1x128x128xbf16>
    %72 = vector.shape_cast %71 : vector<1x128x128xbf16> to vector<128x128xbf16>
    %cst_51 = arith.constant dense<0.000000e+00> : vector<16x128xf32>
    %73 = tpu.matmul %70, %72, %cst_51 {dimension_numbers = #tpu.dot_dimension_numbers<[1], [0], [0], [1], [0, 0, 1, 1], [], []>} : vector<16x128xbf16>, vector<128x128xbf16>, vector<16x128xf32> -> vector<16x128xf32>
    %c7_52 = arith.constant 7 : index
    %c0_53 = arith.constant 0 : index
    %c0_54 = arith.constant 0 : index
    %74 = vector.load %arg3[%c7_52, %c0_53, %c0_54] : memref<10x1x128xf32, #tpu.memory_space<vmem>>, vector<1x1x128xf32>
    %75 = vector.shape_cast %74 : vector<1x1x128xf32> to vector<1x128xf32>
    %76 = vector.broadcast %75 : vector<1x128xf32> to vector<16x128xf32>
    %77 = arith.addf %73, %76 : vector<16x128xf32>
    %cst_55 = arith.constant 0.000000e+00 : f32
    %78 = vector.broadcast %cst_55 : f32 to vector<16x128xf32>
    %79 = arith.maximumf %77, %78 : vector<16x128xf32>
    %80 = arith.truncf %79 : vector<16x128xf32> to vector<16x128xbf16>
    %c8 = arith.constant 8 : index
    %c0_56 = arith.constant 0 : index
    %c0_57 = arith.constant 0 : index
    %81 = vector.load %arg2[%c8, %c0_56, %c0_57] : memref<10x128x128xbf16, #tpu.memory_space<vmem>>, vector<1x128x128xbf16>
    %82 = vector.shape_cast %81 : vector<1x128x128xbf16> to vector<128x128xbf16>
    %cst_58 = arith.constant dense<0.000000e+00> : vector<16x128xf32>
    %83 = tpu.matmul %80, %82, %cst_58 {dimension_numbers = #tpu.dot_dimension_numbers<[1], [0], [0], [1], [0, 0, 1, 1], [], []>} : vector<16x128xbf16>, vector<128x128xbf16>, vector<16x128xf32> -> vector<16x128xf32>
    %c8_59 = arith.constant 8 : index
    %c0_60 = arith.constant 0 : index
    %c0_61 = arith.constant 0 : index
    %84 = vector.load %arg3[%c8_59, %c0_60, %c0_61] : memref<10x1x128xf32, #tpu.memory_space<vmem>>, vector<1x1x128xf32>
    %85 = vector.shape_cast %84 : vector<1x1x128xf32> to vector<1x128xf32>
    %86 = vector.broadcast %85 : vector<1x128xf32> to vector<16x128xf32>
    %87 = arith.addf %83, %86 : vector<16x128xf32>
    %cst_62 = arith.constant 0.000000e+00 : f32
    %88 = vector.broadcast %cst_62 : f32 to vector<16x128xf32>
    %89 = arith.maximumf %87, %88 : vector<16x128xf32>
    %90 = arith.truncf %89 : vector<16x128xf32> to vector<16x128xbf16>
    %c9 = arith.constant 9 : index
    %c0_63 = arith.constant 0 : index
    %c0_64 = arith.constant 0 : index
    %91 = vector.load %arg2[%c9, %c0_63, %c0_64] : memref<10x128x128xbf16, #tpu.memory_space<vmem>>, vector<1x128x128xbf16>
    %92 = vector.shape_cast %91 : vector<1x128x128xbf16> to vector<128x128xbf16>
    %cst_65 = arith.constant dense<0.000000e+00> : vector<16x128xf32>
    %93 = tpu.matmul %90, %92, %cst_65 {dimension_numbers = #tpu.dot_dimension_numbers<[1], [0], [0], [1], [0, 0, 1, 1], [], []>} : vector<16x128xbf16>, vector<128x128xbf16>, vector<16x128xf32> -> vector<16x128xf32>
    %c9_66 = arith.constant 9 : index
    %c0_67 = arith.constant 0 : index
    %c0_68 = arith.constant 0 : index
    %94 = vector.load %arg3[%c9_66, %c0_67, %c0_68] : memref<10x1x128xf32, #tpu.memory_space<vmem>>, vector<1x1x128xf32>
    %95 = vector.shape_cast %94 : vector<1x1x128xf32> to vector<1x128xf32>
    %96 = vector.broadcast %95 : vector<1x128xf32> to vector<16x128xf32>
    %97 = arith.addf %93, %96 : vector<16x128xf32>
    %98 = vector.extract_strided_slice %97 {offsets = [0, 0], sizes = [16, 64], strides = [1, 1]} : vector<16x128xf32> to vector<16x64xf32>
    %99 = vector.extract_strided_slice %49 {offsets = [0, 0], sizes = [16, 64], strides = [1, 1]} : vector<16x128xf32> to vector<16x64xf32>
    %100 = tpu.concatenate %98, %99 in 1 : vector<16x64xf32>, vector<16x64xf32> -> vector<16x128xf32>
    %c0_69 = arith.constant 0 : index
    %c0_70 = arith.constant 0 : index
    %101 = vector.load %arg4[%c0_69, %c0_70] : memref<16x128xf32, #tpu.memory_space<vmem>>, vector<16x128xf32>
    tpu.vector_store %arg4[%c0_69, %c0_70], %100 {strides = array<i32>} : memref<16x128xf32, #tpu.memory_space<vmem>>, vector<16x128xf32>,
    return
  }
  func.func @transform_0(%arg0: i32) -> (i32, i32) {
    %c0_i32 = arith.constant 0 : i32
    %c0_i32_0 = arith.constant 0 : i32
    return %arg0, %c0_i32 : i32, i32
  }
  func.func @transform_1(%arg0: i32) -> (i32, i32, i32) {
    %c0_i32 = arith.constant 0 : i32
    %c0_i32_0 = arith.constant 0 : i32
    %c0_i32_1 = arith.constant 0 : i32
    %c0_i32_2 = arith.constant 0 : i32
    return %c0_i32, %c0_i32_0, %c0_i32_1 : i32, i32, i32
  }
  func.func @transform_2(%arg0: i32) -> (i32, i32, i32) {
    %c0_i32 = arith.constant 0 : i32
    %c0_i32_0 = arith.constant 0 : i32
    %c0_i32_1 = arith.constant 0 : i32
    %c0_i32_2 = arith.constant 0 : i32
    return %c0_i32, %c0_i32_0, %c0_i32_1 : i32, i32, i32
  }
  func.func @transform_3(%arg0: i32) -> (i32, i32) {
    %c0_i32 = arith.constant 0 : i32
    %c0_i32_0 = arith.constant 0 : i32
    return %arg0, %c0_i32 : i32, i32
  }
}

</mosaic_0001>

<llo_original>
// kernel: tpu_custom_call.1
$region0: #{tpu_custom_call.1}
  #allocation0 [shape = 'u32[]', space=smem, size = 0x4, offset = 0x4, fixed_abs, tag = 'smem constant byte address 0x4 - core index']
  #allocation1 [shape = 'u32[144,128]{1,0:T(1,128)}', space=vmem, size = 0x12000, scoped, tag = 'internal scratch']
  %s0 = inlined_call_operand.hbm [shape: f32[16,32], index: 0, kind: input, shape index: {}]
  %s1 = inlined_call_operand.hbm [shape: bf16[10,128,128], index: 1, kind: input, shape index: {}]
  %s2 = inlined_call_operand.hbm [shape: f32[10,1,128], index: 2, kind: input, shape index: {}]
  %s3 = inlined_call_operand.hbm [shape: f32[16,128], index: 3, kind: output, shape index: {}]
  %s4 = sld [smem:[#allocation0]]
  $region34: #{tpu_custom_call.1} parent=0
    _
  %s6 = ssub.s32 1, %s4
  %s7 = scalar_select 0, %s6, %s4
  $region1: #{tpu_custom_call.1} parent=0
    #allocation2 [shape = 'u8[8192]{0}', space=vmem, size = 0x2000, scoped, tag = 'input window, operand 0, single buffered']
    #allocation3 [shape = 's32[1]{0}', space=sflag, size = 0x4, scoped, tag = 'scoped memory for tpu_custom_call.1']
    #allocation4 [shape = 's32[1]{0}', space=sflag, size = 0x4, scoped, tag = 'scoped memory for tpu_custom_call.1']
    #allocation5 [shape = 'u8[327680]{0}', space=vmem, size = 0x50000, scoped, tag = 'input window, operand 1, single buffered']
    #allocation6 [shape = 's32[1]{0}', space=sflag, size = 0x4, scoped, tag = 'scoped memory for tpu_custom_call.1']
    #allocation7 [shape = 'u8[5120]{0}', space=vmem, size = 0x1400, scoped, tag = 'input window, operand 2, single buffered']
    #allocation8 [shape = 'u8[8192]{0}', space=vmem, size = 0x2000, scoped, tag = 'output window, operand 0, single buffered']
    %8 = vsyncpa [#allocation3], 0
    %9 = vsyncpa [#allocation6], 0
    %10 = vsyncpa [#allocation4], 0
    // Predicated region
    $region2: #{tpu_custom_call.1} parent=1 // pred_check
      _
    $region3: #{tpu_custom_call.1} parent=1 // pred_check_branch
      %12 = sbr.rel (0) target = $region5
    $region4: #{tpu_custom_call.1} parent=1 // pred_region
      %s14 = ssub.s32 256, 256
      %15 = vsyncadd [#allocation3], %s14
      %s16 = sshll.u32 [#allocation2], 4
      %s17 = int_to_ptr.vmem [resolvable:$true] %s16
      %22 = dma.hbm_to_vmem [thread:$0]  %s0, 256, %s17, [#allocation3], 128, 128, 8
    $region5: #{tpu_custom_call.1} parent=1 // pred_fallthru
      _
    // Predicated region
    $region6: #{tpu_custom_call.1} parent=1 // pred_check
      _
    $region7: #{tpu_custom_call.1} parent=1 // pred_check_branch
      %24 = sbr.rel (0) target = $region9
    $region8: #{tpu_custom_call.1} parent=1 // pred_region
      %s26 = ssub.s32 10240, 10240
      %27 = vsyncadd [#allocation6], %s26
      %s28 = sshll.u32 [#allocation5], 4
      %s29 = int_to_ptr.vmem [resolvable:$true] %s28
      %34 = dma.hbm_to_vmem [thread:$0]  %s1, 10240, %s29, [#allocation6], 64, 64, 4
    $region9: #{tpu_custom_call.1} parent=1 // pred_fallthru
      _
    // Predicated region
    $region10: #{tpu_custom_call.1} parent=1 // pred_check
      _
    $region11: #{tpu_custom_call.1} parent=1 // pred_check_branch
      %36 = sbr.rel (0) target = $region13
    $region12: #{tpu_custom_call.1} parent=1 // pred_region
      %s38 = ssub.s32 160, 160
      %39 = vsyncadd [#allocation6], %s38
      %s40 = sshll.u32 [#allocation7], 4
      %s41 = int_to_ptr.vmem [resolvable:$true] %s40
      %46 = dma.hbm_to_vmem [thread:$0]  %s2, 160, %s41, [#allocation6], 16, 16, 1
    $region13: #{tpu_custom_call.1} parent=1 // pred_fallthru
      _
    // Predicated region
    $region14: #{tpu_custom_call.1} parent=1 // pred_check
      _
    $region15: #{tpu_custom_call.1} parent=1 // pred_check_branch
      %48 = sbr.rel (0) target = $region17
    $region16: #{tpu_custom_call.1} parent=1 // pred_region
      %49 = dma.done [#allocation3], 256
    $region17: #{tpu_custom_call.1} parent=1 // pred_fallthru
      _
    // Predicated region
    $region18: #{tpu_custom_call.1} parent=1 // pred_check
      _
    $region19: #{tpu_custom_call.1} parent=1 // pred_check_branch
      %51 = sbr.rel (0) target = $region21
    $region20: #{tpu_custom_call.1} parent=1 // pred_region
      %52 = dma.done [#allocation6], 10240
    $region21: #{tpu_custom_call.1} parent=1 // pred_fallthru
      _
    // Predicated region
    $region22: #{tpu_custom_call.1} parent=1 // pred_check
      _
    $region23: #{tpu_custom_call.1} parent=1 // pred_check_branch
      %54 = sbr.rel (0) target = $region25
    $region24: #{tpu_custom_call.1} parent=1 // pred_region
      %55 = dma.done [#allocation6], 160
    $region25: #{tpu_custom_call.1} parent=1 // pred_fallthru
      _
    %v57 = vld [vmem:[#allocation2] sm:$0xff]
    %v58 = vld [vmem:[#allocation2 + $0x8] sm:$0xff]
    %v59 = vpack.c.bf16 %v58, %v57
    %v60 = vld [vmem:[#allocation5] sm:$0xf]
    %v61 = vld [vmem:[#allocation5 + $0x4] sm:$0xf]
    %v62 = vld [vmem:[#allocation5 + $0x8] sm:$0xf]
    %v63 = vld [vmem:[#allocation5 + $0xc] sm:$0xf]
    %v64 = vld [vmem:[#allocation7] sm:$0x1]
    %v66 = vlaneseq
    %v67 = vshrl.u32 %v66, 7
    %v68 = vsub.s32 0, %v67
    %v69 = vrot.slane %v64, %v68
    %v75 = vunpack.c.l.b16 %v60
    %v76 = vunpack.c.l.b16 %v61
    %v77 = vunpack.c.l.b16 %v62
    %v78 = vunpack.c.l.b16 %v63
    %v79 = vpack.c.b16 %v76, %v75
    %v80 = vpack.c.b16 %v78, %v77
    %vm83 = vcmask 261120
    %v85 = vsel %vm83, %v59, 0
    %87 = vmatprep.subr.bf16.mxu0 0
    %88 = vmatpush1.bf16.msra.mxu0 %v79
    %89 = vmatprep.subr.bf16.mxu0 0
    %90 = vmatpush1.bf16.msra.mxu0 %v80
    %91 = vmatprep.subr.bf16.mxu0 0
    %92 = vmatpush1.bf16.msra.mxu0 0
    %93 = vmatprep.subr.bf16.mxu0 0
    %94 = vmatpush1.bf16.msra.mxu0 0
    %95 = vmatprep.subr.bf16.mxu0 0
    %96 = vmatpush1.bf16.msra.mxu0 0
    %97 = vmatprep.subr.bf16.mxu0 0
    %98 = vmatpush1.bf16.msra.mxu0 0
    %99 = vmatprep.subr.bf16.mxu0 0
    %100 = vmatpush1.bf16.msra.mxu0 0
    %101 = vmatprep.subr.bf16.mxu0 0
    %102 = vmatpush1.bf16.msra.mxu0 0
    %103 = vmatprep.subr.bf16.mxu0 0
    %104 = vmatpush1.bf16.msra.mxu0 0
    %105 = vmatprep.subr.bf16.mxu0 0
    %106 = vmatpush1.bf16.msra.mxu0 0
    %107 = vmatprep.subr.bf16.mxu0 0
    %108 = vmatpush1.bf16.msra.mxu0 0
    %109 = vmatprep.subr.bf16.mxu0 0
    %110 = vmatpush1.bf16.msra.mxu0 0
    %111 = vmatprep.subr.bf16.mxu0 0
    %112 = vmatpush1.bf16.msra.mxu0 0
    %113 = vmatprep.subr.bf16.mxu0 0
    %114 = vmatpush1.bf16.msra.mxu0 0
    %115 = vmatprep.subr.bf16.mxu0 0
    %116 = vmatpush1.bf16.msra.mxu0 0
    %117 = vmatprep.subr.bf16.mxu0 0
    %118 = vmatpush1.bf16.msra.mxu0 0
    %119 = vmatprep.mubr.bf16.mxu0 0
    %120 = vmatmul.mubr.bf16.gmra.mrb[0].mxu0 %v85
    %v121 = vpop.f32.mrb[0].mxu0
    %v122 = vadd.f32 %v69, %v121
    %v123 = vpop.f32.mrb[0].mxu0
    %v124 = vpop.f32.mrb[0].mxu0
    %v125 = vadd.f32 %v69, %v124
    %v126 = vpop.f32.mrb[0].mxu0
    %127 = vdwg.mxu0
    %v128 = vmax.f32 %v122, 0.0
    %v129 = vmax.f32 %v125, 0.0
    %v130 = vpack.c.bf16 %v129, %v128
    %s131 = scalar_lea.vmem [#allocation5], 64
    %v132 = vld [vmem:[%s131] sm:$0xf]
    %v133 = vld [vmem:[%s131 + $0x4] sm:$0xf]
    %v134 = vld [vmem:[%s131 + $0x8] sm:$0xf]
    %v135 = vld [vmem:[%s131 + $0xc] sm:$0xf]
    %v136 = vld [vmem:[%s131 + $0x10] sm:$0xf]
    %v137 = vld [vmem:[%s131 + $0x14] sm:$0xf]
    %v138 = vld [vmem:[%s131 + $0x18] sm:$0xf]
    %v139 = vld [vmem:[%s131 + $0x1c] sm:$0xf]
    %v140 = vld [vmem:[%s131 + $0x20] sm:$0xf]
    %v141 = vld [vmem:[%s131 + $0x24] sm:$0xf]
    %v142 = vld [vmem:[%s131 + $0x28] sm:$0xf]
    %v143 = vld [vmem:[%s131 + $0x2c] sm:$0xf]
    %v144 = vld [vmem:[%s131 + $0x30] sm:$0xf]
    %v145 = vld [vmem:[%s131 + $0x34] sm:$0xf]
    %v146 = vld [vmem:[%s131 + $0x38] sm:$0xf]
    %v147 = vld [vmem:[%s131 + $0x3c] sm:$0xf]
    %s148 = scalar_lea.vmem [#allocation7], 1
    %v149 = vld [vmem:[%s148] sm:$0x1]
    %v151 = vlaneseq
    %v152 = vshrl.u32 %v151, 7
    %v153 = vsub.s32 0, %v152
    %v154 = vrot.slane %v149, %v153
    %v172 = vunpack.c.l.b16 %v132
    %v173 = vunpack.c.l.b16 %v133
    %v174 = vunpack.c.l.b16 %v134
    %v175 = vunpack.c.l.b16 %v135
    %v176 = vunpack.c.l.b16 %v136
    %v177 = vunpack.c.l.b16 %v137
    %v178 = vunpack.c.l.b16 %v138
    %v179 = vunpack.c.l.b16 %v139
    %v180 = vunpack.c.l.b16 %v140
    %v181 = vunpack.c.l.b16 %v141
    %v182 = vunpack.c.l.b16 %v142
    %v183 = vunpack.c.l.b16 %v143
    %v184 = vunpack.c.l.b16 %v144
    %v185 = vunpack.c.l.b16 %v145
    %v186 = vunpack.c.l.b16 %v146
    %v187 = vunpack.c.l.b16 %v147
    %v188 = vpack.c.b16 %v173, %v172
    %v189 = vpack.c.b16 %v175, %v174
    %v190 = vpack.c.b16 %v177, %v176
    %v191 = vpack.c.b16 %v179, %v178
    %v192 = vpack.c.b16 %v181, %v180
    %v193 = vpack.c.b16 %v183, %v182
    %v194 = vpack.c.b16 %v185, %v184
    %v195 = vpack.c.b16 %v187, %v186
    %204 = vmatprep.subr.bf16.mxu0 0
    %205 = vmatpush1.bf16.msra.mxu0 %v188
    %206 = vmatprep.subr.bf16.mxu0 0
    %207 = vmatpush1.bf16.msra.mxu0 %v189
    %208 = vmatprep.subr.bf16.mxu0 0
    %209 = vmatpush1.bf16.msra.mxu0 %v190
    %210 = vmatprep.subr.bf16.mxu0 0
    %211 = vmatpush1.bf16.msra.mxu0 %v191
    %212 = vmatprep.subr.bf16.mxu0 0
    %213 = vmatpush1.bf16.msra.mxu0 %v192
    %214 = vmatprep.subr.bf16.mxu0 0
    %215 = vmatpush1.bf16.msra.mxu0 %v193
    %216 = vmatprep.subr.bf16.mxu0 0
    %217 = vmatpush1.bf16.msra.mxu0 %v194
    %218 = vmatprep.subr.bf16.mxu0 0
    %219 = vmatpush1.bf16.msra.mxu0 %v195
    %220 = vmatprep.subr.bf16.mxu0 0
    %221 = vmatpush1.bf16.msra.mxu0 0
    %222 = vmatprep.subr.bf16.mxu0 0
    %223 = vmatpush1.bf16.msra.mxu0 0
    %224 = vmatprep.subr.bf16.mxu0 0
    %225 = vmatpush1.bf16.msra.mxu0 0
    %226 = vmatprep.subr.bf16.mxu0 0
    %227 = vmatpush1.bf16.msra.mxu0 0
    %228 = vmatprep.subr.bf16.mxu0 0
    %229 = vmatpush1.bf16.msra.mxu0 0
    %230 = vmatprep.subr.bf16.mxu0 0
    %231 = vmatpush1.bf16.msra.mxu0 0
    %232 = vmatprep.subr.bf16.mxu0 0
    %233 = vmatpush1.bf16.msra.mxu0 0
    %234 = vmatprep.subr.bf16.mxu0 0
    %235 = vmatpush1.bf16.msra.mxu0 0
    %236 = vmatprep.mubr.bf16.mxu0 0
    %237 = vmatmul.mubr.bf16.gmra.mrb[0].mxu0 %v130
    %v238 = vpop.f32.mrb[0].mxu0
    %v239 = vadd.f32 %v154, %v238
    %v240 = vpop.f32.mrb[0].mxu0
    %v241 = vpop.f32.mrb[0].mxu0
    %v242 = vadd.f32 %v154, %v241
    %v243 = vpop.f32.mrb[0].mxu0
    %244 = vdwg.mxu0
    %v245 = vmax.f32 %v239, 0.0
    %v246 = vmax.f32 %v242, 0.0
    %v247 = vpack.c.bf16 %v246, %v245
    %s248 = scalar_lea.vmem [#allocation5], 128
    %v249 = vld [vmem:[%s248] sm:$0xf]
    %v250 = vld [vmem:[%s248 + $0x4] sm:$0xf]
    %v251 = vld [vmem:[%s248 + $0x8] sm:$0xf]
    %v252 = vld [vmem:[%s248 + $0xc] sm:$0xf]
    %v253 = vld [vmem:[%s248 + $0x10] sm:$0xf]
    %v254 = vld [vmem:[%s248 + $0x14] sm:$0xf]
    %v255 = vld [vmem:[%s248 + $0x18] sm:$0xf]
    %v256 = vld [vmem:[%s248 + $0x1c] sm:$0xf]
    %v257 = vld [vmem:[%s248 + $0x20] sm:$0xf]
    %v258 = vld [vmem:[%s248 + $0x24] sm:$0xf]
    %v259 = vld [vmem:[%s248 + $0x28] sm:$0xf]
    %v260 = vld [vmem:[%s248 + $0x2c] sm:$0xf]
    %v261 = vld [vmem:[%s248 + $0x30] sm:$0xf]
    %v262 = vld [vmem:[%s248 + $0x34] sm:$0xf]
    %v263 = vld [vmem:[%s248 + $0x38] sm:$0xf]
    %v264 = vld [vmem:[%s248 + $0x3c] sm:$0xf]
    %s265 = scalar_lea.vmem [#allocation7], 2
    %v266 = vld [vmem:[%s265] sm:$0x1]
    %v268 = vlaneseq
    %v269 = vshrl.u32 %v268, 7
    %v270 = vsub.s32 0, %v269
    %v271 = vrot.slane %v266, %v270
    %v289 = vunpack.c.l.b16 %v249
    %v290 = vunpack.c.l.b16 %v250
    %v291 = vunpack.c.l.b16 %v251
    %v292 = vunpack.c.l.b16 %v252
    %v293 = vunpack.c.l.b16 %v253
    %v294 = vunpack.c.l.b16 %v254
    %v295 = vunpack.c.l.b16 %v255
    %v296 = vunpack.c.l.b16 %v256
    %v297 = vunpack.c.l.b16 %v257
    %v298 = vunpack.c.l.b16 %v258
    %v299 = vunpack.c.l.b16 %v259
    %v300 = vunpack.c.l.b16 %v260
    %v301 = vunpack.c.l.b16 %v261
    %v302 = vunpack.c.l.b16 %v262
    %v303 = vunpack.c.l.b16 %v263
    %v304 = vunpack.c.l.b16 %v264
    %v305 = vpack.c.b16 %v290, %v289
    %v306 = vpack.c.b16 %v292, %v291
    %v307 = vpack.c.b16 %v294, %v293
    %v308 = vpack.c.b16 %v296, %v295
    %v309 = vpack.c.b16 %v298, %v297
    %v310 = vpack.c.b16 %v300, %v299
    %v311 = vpack.c.b16 %v302, %v301
    %v312 = vpack.c.b16 %v304, %v303
    %321 = vmatprep.subr.bf16.mxu0 0
    %322 = vmatpush1.bf16.msra.mxu0 %v305
    %323 = vmatprep.subr.bf16.mxu0 0
    %324 = vmatpush1.bf16.msra.mxu0 %v306
    %325 = vmatprep.subr.bf16.mxu0 0
    %326 = vmatpush1.bf16.msra.mxu0 %v307
    %327 = vmatprep.subr.bf16.mxu0 0
    %328 = vmatpush1.bf16.msra.mxu0 %v308
    %329 = vmatprep.subr.bf16.mxu0 0
    %330 = vmatpush1.bf16.msra.mxu0 %v309
    %331 = vmatprep.subr.bf16.mxu0 0
    %332 = vmatpush1.bf16.msra.mxu0 %v310
    %333 = vmatprep.subr.bf16.mxu0 0
    %334 = vmatpush1.bf16.msra.mxu0 %v311
    %335 = vmatprep.subr.bf16.mxu0 0
    %336 = vmatpush1.bf16.msra.mxu0 %v312
    %337 = vmatprep.subr.bf16.mxu0 0
    %338 = vmatpush1.bf16.msra.mxu0 0
    %339 = vmatprep.subr.bf16.mxu0 0
    %340 = vmatpush1.bf16.msra.mxu0 0
    %341 = vmatprep.subr.bf16.mxu0 0
    %342 = vmatpush1.bf16.msra.mxu0 0
    %343 = vmatprep.subr.bf16.mxu0 0
    %344 = vmatpush1.bf16.msra.mxu0 0
    %345 = vmatprep.subr.bf16.mxu0 0
    %346 = vmatpush1.bf16.msra.mxu0 0
    %347 = vmatprep.subr.bf16.mxu0 0
    %348 = vmatpush1.bf16.msra.mxu0 0
    %349 = vmatprep.subr.bf16.mxu0 0
    %350 = vmatpush1.bf16.msra.mxu0 0
    %351 = vmatprep.subr.bf16.mxu0 0
    %352 = vmatpush1.bf16.msra.mxu0 0
    %353 = vmatprep.mubr.bf16.mxu0 0
    %354 = vmatmul.mubr.bf16.gmra.mrb[0].mxu0 %v247
    %v355 = vpop.f32.mrb[0].mxu0
    %v356 = vadd.f32 %v271, %v355
    %v357 = vpop.f32.mrb[0].mxu0
    %v358 = vpop.f32.mrb[0].mxu0
    %v359 = vadd.f32 %v271, %v358
    %v360 = vpop.f32.mrb[0].mxu0
    %361 = vdwg.mxu0
    %v362 = vmax.f32 %v356, 0.0
    %v363 = vmax.f32 %v359, 0.0
    %v364 = vpack.c.bf16 %v363, %v362
    %s365 = scalar_lea.vmem [#allocation5], 192
    %v366 = vld [vmem:[%s365] sm:$0xf]
    %v367 = vld [vmem:[%s365 + $0x4] sm:$0xf]
    %v368 = vld [vmem:[%s365 + $0x8] sm:$0xf]
    %v369 = vld [vmem:[%s365 + $0xc] sm:$0xf]
    %v370 = vld [vmem:[%s365 + $0x10] sm:$0xf]
    %v371 = vld [vmem:[%s365 + $0x14] sm:$0xf]
    %v372 = vld [vmem:[%s365 + $0x18] sm:$0xf]
    %v373 = vld [vmem:[%s365 + $0x1c] sm:$0xf]
    %v374 = vld [vmem:[%s365 + $0x20] sm:$0xf]
    %v375 = vld [vmem:[%s365 + $0x24] sm:$0xf]
    %v376 = vld [vmem:[%s365 + $0x28] sm:$0xf]
    %v377 = vld [vmem:[%s365 + $0x2c] sm:$0xf]
    %v378 = vld [vmem:[%s365 + $0x30] sm:$0xf]
    %v379 = vld [vmem:[%s365 + $0x34] sm:$0xf]
    %v380 = vld [vmem:[%s365 + $0x38] sm:$0xf]
    %v381 = vld [vmem:[%s365 + $0x3c] sm:$0xf]
    %s382 = scalar_lea.vmem [#allocation7], 3
    %v383 = vld [vmem:[%s382] sm:$0x1]
    %v385 = vlaneseq
    %v386 = vshrl.u32 %v385, 7
    %v387 = vsub.s32 0, %v386
    %v388 = vrot.slane %v383, %v387
    %v406 = vunpack.c.l.b16 %v366
    %v407 = vunpack.c.l.b16 %v367
    %v408 = vunpack.c.l.b16 %v368
    %v409 = vunpack.c.l.b16 %v369
    %v410 = vunpack.c.l.b16 %v370
    %v411 = vunpack.c.l.b16 %v371
    %v412 = vunpack.c.l.b16 %v372
    %v413 = vunpack.c.l.b16 %v373
    %v414 = vunpack.c.l.b16 %v374
    %v415 = vunpack.c.l.b16 %v375
    %v416 = vunpack.c.l.b16 %v376
    %v417 = vunpack.c.l.b16 %v377
    %v418 = vunpack.c.l.b16 %v378
    %v419 = vunpack.c.l.b16 %v379
    %v420 = vunpack.c.l.b16 %v380
    %v421 = vunpack.c.l.b16 %v381
    %v422 = vpack.c.b16 %v407, %v406
    %v423 = vpack.c.b16 %v409, %v408
    %v424 = vpack.c.b16 %v411, %v410
    %v425 = vpack.c.b16 %v413, %v412
    %v426 = vpack.c.b16 %v415, %v414
    %v427 = vpack.c.b16 %v417, %v416
    %v428 = vpack.c.b16 %v419, %v418
    %v429 = vpack.c.b16 %v421, %v420
    %438 = vmatprep.subr.bf16.mxu0 0
    %439 = vmatpush1.bf16.msra.mxu0 %v422
    %440 = vmatprep.subr.bf16.mxu0 0
    %441 = vmatpush1.bf16.msra.mxu0 %v423
    %442 = vmatprep.subr.bf16.mxu0 0
    %443 = vmatpush1.bf16.msra.mxu0 %v424
    %444 = vmatprep.subr.bf16.mxu0 0
    %445 = vmatpush1.bf16.msra.mxu0 %v425
    %446 = vmatprep.subr.bf16.mxu0 0
    %447 = vmatpush1.bf16.msra.mxu0 %v426
    %448 = vmatprep.subr.bf16.mxu0 0
    %449 = vmatpush1.bf16.msra.mxu0 %v427
    %450 = vmatprep.subr.bf16.mxu0 0
    %451 = vmatpush1.bf16.msra.mxu0 %v428
    %452 = vmatprep.subr.bf16.mxu0 0
    %453 = vmatpush1.bf16.msra.mxu0 %v429
    %454 = vmatprep.subr.bf16.mxu0 0
    %455 = vmatpush1.bf16.msra.mxu0 0
    %456 = vmatprep.subr.bf16.mxu0 0
    %457 = vmatpush1.bf16.msra.mxu0 0
    %458 = vmatprep.subr.bf16.mxu0 0
    %459 = vmatpush1.bf16.msra.mxu0 0
    %460 = vmatprep.subr.bf16.mxu0 0
    %461 = vmatpush1.bf16.msra.mxu0 0
    %462 = vmatprep.subr.bf16.mxu0 0
    %463 = vmatpush1.bf16.msra.mxu0 0
    %464 = vmatprep.subr.bf16.mxu0 0
    %465 = vmatpush1.bf16.msra.mxu0 0
    %466 = vmatprep.subr.bf16.mxu0 0
    %467 = vmatpush1.bf16.msra.mxu0 0
    %468 = vmatprep.subr.bf16.mxu0 0
    %469 = vmatpush1.bf16.msra.mxu0 0
    %470 = vmatprep.mubr.bf16.mxu0 0
    %471 = vmatmul.mubr.bf16.gmra.mrb[0].mxu0 %v364
    %v472 = vpop.f32.mrb[0].mxu0
    %v473 = vadd.f32 %v388, %v472
    %v474 = vpop.f32.mrb[0].mxu0
    %v475 = vpop.f32.mrb[0].mxu0
    %v476 = vadd.f32 %v388, %v475
    %v477 = vpop.f32.mrb[0].mxu0
    %478 = vdwg.mxu0
    %v479 = vmax.f32 %v473, 0.0
    %v480 = vmax.f32 %v476, 0.0
    %v481 = vpack.c.bf16 %v480, %v479
    %s482 = scalar_lea.vmem [#allocation5], 256
    %v483 = vld [vmem:[%s482] sm:$0xf]
    %v484 = vld [vmem:[%s482 + $0x4] sm:$0xf]
    %v485 = vld [vmem:[%s482 + $0x8] sm:$0xf]
    %v486 = vld [vmem:[%s482 + $0xc] sm:$0xf]
    %v487 = vld [vmem:[%s482 + $0x10] sm:$0xf]
    %v488 = vld [vmem:[%s482 + $0x14] sm:$0xf]
    %v489 = vld [vmem:[%s482 + $0x18] sm:$0xf]
    %v490 = vld [vmem:[%s482 + $0x1c] sm:$0xf]
    %v491 = vld [vmem:[%s482 + $0x20] sm:$0xf]
    %v492 = vld [vmem:[%s482 + $0x24] sm:$0xf]
    %v493 = vld [vmem:[%s482 + $0x28] sm:$0xf]
    %v494 = vld [vmem:[%s482 + $0x2c] sm:$0xf]
    %v495 = vld [vmem:[%s482 + $0x30] sm:$0xf]
    %v496 = vld [vmem:[%s482 + $0x34] sm:$0xf]
    %v497 = vld [vmem:[%s482 + $0x38] sm:$0xf]
    %v498 = vld [vmem:[%s482 + $0x3c] sm:$0xf]
    %s499 = scalar_lea.vmem [#allocation7], 4
    %v500 = vld [vmem:[%s499] sm:$0x1]
    %v502 = vlaneseq
    %v503 = vshrl.u32 %v502, 7
    %v504 = vsub.s32 0, %v503
    %v505 = vrot.slane %v500, %v504
    %v523 = vunpack.c.l.b16 %v483
    %v524 = vunpack.c.l.b16 %v484
    %v525 = vunpack.c.l.b16 %v485
    %v526 = vunpack.c.l.b16 %v486
    %v527 = vunpack.c.l.b16 %v487
    %v528 = vunpack.c.l.b16 %v488
    %v529 = vunpack.c.l.b16 %v489
    %v530 = vunpack.c.l.b16 %v490
    %v531 = vunpack.c.l.b16 %v491
    %v532 = vunpack.c.l.b16 %v492
    %v533 = vunpack.c.l.b16 %v493
    %v534 = vunpack.c.l.b16 %v494
    %v535 = vunpack.c.l.b16 %v495
    %v536 = vunpack.c.l.b16 %v496
    %v537 = vunpack.c.l.b16 %v497
    %v538 = vunpack.c.l.b16 %v498
    %v539 = vpack.c.b16 %v524, %v523
    %v540 = vpack.c.b16 %v526, %v525
    %v541 = vpack.c.b16 %v528, %v527
    %v542 = vpack.c.b16 %v530, %v529
    %v543 = vpack.c.b16 %v532, %v531
    %v544 = vpack.c.b16 %v534, %v533
    %v545 = vpack.c.b16 %v536, %v535
    %v546 = vpack.c.b16 %v538, %v537
    %555 = vmatprep.subr.bf16.mxu0 0
    %556 = vmatpush1.bf16.msra.mxu0 %v539
    %557 = vmatprep.subr.bf16.mxu0 0
    %558 = vmatpush1.bf16.msra.mxu0 %v540
    %559 = vmatprep.subr.bf16.mxu0 0
    %560 = vmatpush1.bf16.msra.mxu0 %v541
    %561 = vmatprep.subr.bf16.mxu0 0
    %562 = vmatpush1.bf16.msra.mxu0 %v542
    %563 = vmatprep.subr.bf16.mxu0 0
    %564 = vmatpush1.bf16.msra.mxu0 %v543
    %565 = vmatprep.subr.bf16.mxu0 0
    %566 = vmatpush1.bf16.msra.mxu0 %v544
    %567 = vmatprep.subr.bf16.mxu0 0
    %568 = vmatpush1.bf16.msra.mxu0 %v545
    %569 = vmatprep.subr.bf16.mxu0 0
    %570 = vmatpush1.bf16.msra.mxu0 %v546
    %571 = vmatprep.subr.bf16.mxu0 0
    %572 = vmatpush1.bf16.msra.mxu0 0
    %573 = vmatprep.subr.bf16.mxu0 0
    %574 = vmatpush1.bf16.msra.mxu0 0
    %575 = vmatprep.subr.bf16.mxu0 0
    %576 = vmatpush1.bf16.msra.mxu0 0
    %577 = vmatprep.subr.bf16.mxu0 0
    %578 = vmatpush1.bf16.msra.mxu0 0
    %579 = vmatprep.subr.bf16.mxu0 0
    %580 = vmatpush1.bf16.msra.mxu0 0
    %581 = vmatprep.subr.bf16.mxu0 0
    %582 = vmatpush1.bf16.msra.mxu0 0
    %583 = vmatprep.subr.bf16.mxu0 0
    %584 = vmatpush1.bf16.msra.mxu0 0
    %585 = vmatprep.subr.bf16.mxu0 0
    %586 = vmatpush1.bf16.msra.mxu0 0
    %587 = vmatprep.mubr.bf16.mxu0 0
    %588 = vmatmul.mubr.bf16.gmra.mrb[0].mxu0 %v481
    %v589 = vpop.f32.mrb[0].mxu0
    %v590 = vadd.f32 %v505, %v589
    %v591 = vpop.f32.mrb[0].mxu0
    %v592 = vpop.f32.mrb[0].mxu0
    %v593 = vadd.f32 %v505, %v592
    %v594 = vpop.f32.mrb[0].mxu0
    %595 = vdwg.mxu0
    %v596 = vpack.c.bf16 %v593, %v590
    %s597 = scalar_lea.vmem [#allocation5], 320
    %v598 = vld [vmem:[%s597] sm:$0xf]
    %v599 = vld [vmem:[%s597 + $0x4] sm:$0xf]
    %v600 = vld [vmem:[%s597 + $0x8] sm:$0xf]
    %v601 = vld [vmem:[%s597 + $0xc] sm:$0xf]
    %v602 = vld [vmem:[%s597 + $0x10] sm:$0xf]
    %v603 = vld [vmem:[%s597 + $0x14] sm:$0xf]
    %v604 = vld [vmem:[%s597 + $0x18] sm:$0xf]
    %v605 = vld [vmem:[%s597 + $0x1c] sm:$0xf]
    %v606 = vld [vmem:[%s597 + $0x20] sm:$0xf]
    %v607 = vld [vmem:[%s597 + $0x24] sm:$0xf]
    %v608 = vld [vmem:[%s597 + $0x28] sm:$0xf]
    %v609 = vld [vmem:[%s597 + $0x2c] sm:$0xf]
    %v610 = vld [vmem:[%s597 + $0x30] sm:$0xf]
    %v611 = vld [vmem:[%s597 + $0x34] sm:$0xf]
    %v612 = vld [vmem:[%s597 + $0x38] sm:$0xf]
    %v613 = vld [vmem:[%s597 + $0x3c] sm:$0xf]
    %s614 = scalar_lea.vmem [#allocation7], 5
    %v615 = vld [vmem:[%s614] sm:$0x1]
    %v617 = vlaneseq
    %v618 = vshrl.u32 %v617, 7
    %v619 = vsub.s32 0, %v618
    %v620 = vrot.slane %v615, %v619
    %v638 = vunpack.c.l.b16 %v598
    %v639 = vunpack.c.l.b16 %v599
    %v640 = vunpack.c.l.b16 %v600
    %v641 = vunpack.c.l.b16 %v601
    %v642 = vunpack.c.l.b16 %v602
    %v643 = vunpack.c.l.b16 %v603
    %v644 = vunpack.c.l.b16 %v604
    %v645 = vunpack.c.l.b16 %v605
    %v646 = vunpack.c.l.b16 %v606
    %v647 = vunpack.c.l.b16 %v607
    %v648 = vunpack.c.l.b16 %v608
    %v649 = vunpack.c.l.b16 %v609
    %v650 = vunpack.c.l.b16 %v610
    %v651 = vunpack.c.l.b16 %v611
    %v652 = vunpack.c.l.b16 %v612
    %v653 = vunpack.c.l.b16 %v613
    %v654 = vpack.c.b16 %v639, %v638
    %v655 = vpack.c.b16 %v641, %v640
    %v656 = vpack.c.b16 %v643, %v642
    %v657 = vpack.c.b16 %v645, %v644
    %v658 = vpack.c.b16 %v647, %v646
    %v659 = vpack.c.b16 %v649, %v648
    %v660 = vpack.c.b16 %v651, %v650
    %v661 = vpack.c.b16 %v653, %v652
    %670 = vmatprep.subr.bf16.mxu0 0
    %671 = vmatpush1.bf16.msra.mxu0 %v654
    %672 = vmatprep.subr.bf16.mxu0 0
    %673 = vmatpush1.bf16.msra.mxu0 %v655
    %674 = vmatprep.subr.bf16.mxu0 0
    %675 = vmatpush1.bf16.msra.mxu0 %v656
    %676 = vmatprep.subr.bf16.mxu0 0
    %677 = vmatpush1.bf16.msra.mxu0 %v657
    %678 = vmatprep.subr.bf16.mxu0 0
    %679 = vmatpush1.bf16.msra.mxu0 %v658
    %680 = vmatprep.subr.bf16.mxu0 0
    %681 = vmatpush1.bf16.msra.mxu0 %v659
    %682 = vmatprep.subr.bf16.mxu0 0
    %683 = vmatpush1.bf16.msra.mxu0 %v660
    %684 = vmatprep.subr.bf16.mxu0 0
    %685 = vmatpush1.bf16.msra.mxu0 %v661
    %686 = vmatprep.subr.bf16.mxu0 0
    %687 = vmatpush1.bf16.msra.mxu0 0
    %688 = vmatprep.subr.bf16.mxu0 0
    %689 = vmatpush1.bf16.msra.mxu0 0
    %690 = vmatprep.subr.bf16.mxu0 0
    %691 = vmatpush1.bf16.msra.mxu0 0
    %692 = vmatprep.subr.bf16.mxu0 0
    %693 = vmatpush1.bf16.msra.mxu0 0
    %694 = vmatprep.subr.bf16.mxu0 0
    %695 = vmatpush1.bf16.msra.mxu0 0
    %696 = vmatprep.subr.bf16.mxu0 0
    %697 = vmatpush1.bf16.msra.mxu0 0
    %698 = vmatprep.subr.bf16.mxu0 0
    %699 = vmatpush1.bf16.msra.mxu0 0
    %700 = vmatprep.subr.bf16.mxu0 0
    %701 = vmatpush1.bf16.msra.mxu0 0
    %702 = vmatprep.mubr.bf16.mxu0 0
    %703 = vmatmul.mubr.bf16.gmra.mrb[0].mxu0 %v596
    %v704 = vpop.f32.mrb[0].mxu0
    %v705 = vadd.f32 %v620, %v704
    %v706 = vpop.f32.mrb[0].mxu0
    %v707 = vpop.f32.mrb[0].mxu0
    %v708 = vadd.f32 %v620, %v707
    %v709 = vpop.f32.mrb[0].mxu0
    %710 = vdwg.mxu0
    %v711 = vmax.f32 %v705, 0.0
    %v712 = vmax.f32 %v708, 0.0
    %v713 = vpack.c.bf16 %v712, %v711
    %s714 = scalar_lea.vmem [#allocation5], 384
    %v715 = vld [vmem:[%s714] sm:$0xf]
    %v716 = vld [vmem:[%s714 + $0x4] sm:$0xf]
    %v717 = vld [vmem:[%s714 + $0x8] sm:$0xf]
    %v718 = vld [vmem:[%s714 + $0xc] sm:$0xf]
    %v719 = vld [vmem:[%s714 + $0x10] sm:$0xf]
    %v720 = vld [vmem:[%s714 + $0x14] sm:$0xf]
    %v721 = vld [vmem:[%s714 + $0x18] sm:$0xf]
    %v722 = vld [vmem:[%s714 + $0x1c] sm:$0xf]
    %v723 = vld [vmem:[%s714 + $0x20] sm:$0xf]
    %v724 = vld [vmem:[%s714 + $0x24] sm:$0xf]
    %v725 = vld [vmem:[%s714 + $0x28] sm:$0xf]
    %v726 = vld [vmem:[%s714 + $0x2c] sm:$0xf]
    %v727 = vld [vmem:[%s714 + $0x30] sm:$0xf]
    %v728 = vld [vmem:[%s714 + $0x34] sm:$0xf]
    %v729 = vld [vmem:[%s714 + $0x38] sm:$0xf]
    %v730 = vld [vmem:[%s714 + $0x3c] sm:$0xf]
    %s731 = scalar_lea.vmem [#allocation7], 6
    %v732 = vld [vmem:[%s731] sm:$0x1]
    %v734 = vlaneseq
    %v735 = vshrl.u32 %v734, 7
    %v736 = vsub.s32 0, %v735
    %v737 = vrot.slane %v732, %v736
    %v755 = vunpack.c.l.b16 %v715
    %v756 = vunpack.c.l.b16 %v716
    %v757 = vunpack.c.l.b16 %v717
    %v758 = vunpack.c.l.b16 %v718
    %v759 = vunpack.c.l.b16 %v719
    %v760 = vunpack.c.l.b16 %v720
    %v761 = vunpack.c.l.b16 %v721
    %v762 = vunpack.c.l.b16 %v722
    %v763 = vunpack.c.l.b16 %v723
    %v764 = vunpack.c.l.b16 %v724
    %v765 = vunpack.c.l.b16 %v725
    %v766 = vunpack.c.l.b16 %v726
    %v767 = vunpack.c.l.b16 %v727
    %v768 = vunpack.c.l.b16 %v728
    %v769 = vunpack.c.l.b16 %v729
    %v770 = vunpack.c.l.b16 %v730
    %v771 = vpack.c.b16 %v756, %v755
    %v772 = vpack.c.b16 %v758, %v757
    %v773 = vpack.c.b16 %v760, %v759
    %v774 = vpack.c.b16 %v762, %v761
    %v775 = vpack.c.b16 %v764, %v763
    %v776 = vpack.c.b16 %v766, %v765
    %v777 = vpack.c.b16 %v768, %v767
    %v778 = vpack.c.b16 %v770, %v769
    %787 = vmatprep.subr.bf16.mxu0 0
    %788 = vmatpush1.bf16.msra.mxu0 %v771
    %789 = vmatprep.subr.bf16.mxu0 0
    %790 = vmatpush1.bf16.msra.mxu0 %v772
    %791 = vmatprep.subr.bf16.mxu0 0
    %792 = vmatpush1.bf16.msra.mxu0 %v773
    %793 = vmatprep.subr.bf16.mxu0 0
    %794 = vmatpush1.bf16.msra.mxu0 %v774
    %795 = vmatprep.subr.bf16.mxu0 0
    %796 = vmatpush1.bf16.msra.mxu0 %v775
    %797 = vmatprep.subr.bf16.mxu0 0
    %798 = vmatpush1.bf16.msra.mxu0 %v776
    %799 = vmatprep.subr.bf16.mxu0 0
    %800 = vmatpush1.bf16.msra.mxu0 %v777
    %801 = vmatprep.subr.bf16.mxu0 0
    %802 = vmatpush1.bf16.msra.mxu0 %v778
    %803 = vmatprep.subr.bf16.mxu0 0
    %804 = vmatpush1.bf16.msra.mxu0 0
    %805 = vmatprep.subr.bf16.mxu0 0
    %806 = vmatpush1.bf16.msra.mxu0 0
    %807 = vmatprep.subr.bf16.mxu0 0
    %808 = vmatpush1.bf16.msra.mxu0 0
    %809 = vmatprep.subr.bf16.mxu0 0
    %810 = vmatpush1.bf16.msra.mxu0 0
    %811 = vmatprep.subr.bf16.mxu0 0
    %812 = vmatpush1.bf16.msra.mxu0 0
    %813 = vmatprep.subr.bf16.mxu0 0
    %814 = vmatpush1.bf16.msra.mxu0 0
    %815 = vmatprep.subr.bf16.mxu0 0
    %816 = vmatpush1.bf16.msra.mxu0 0
    %817 = vmatprep.subr.bf16.mxu0 0
    %818 = vmatpush1.bf16.msra.mxu0 0
    %819 = vmatprep.mubr.bf16.mxu0 0
    %820 = vmatmul.mubr.bf16.gmra.mrb[0].mxu0 %v713
    %v821 = vpop.f32.mrb[0].mxu0
    %v822 = vadd.f32 %v737, %v821
    %v823 = vpop.f32.mrb[0].mxu0
    %v824 = vpop.f32.mrb[0].mxu0
    %v825 = vadd.f32 %v737, %v824
    %v826 = vpop.f32.mrb[0].mxu0
    %827 = vdwg.mxu0
    %v828 = vmax.f32 %v822, 0.0
    %v829 = vmax.f32 %v825, 0.0
    %v830 = vpack.c.bf16 %v829, %v828
    %s831 = scalar_lea.vmem [#allocation5], 448
    %v832 = vld [vmem:[%s831] sm:$0xf]
    %v833 = vld [vmem:[%s831 + $0x4] sm:$0xf]
    %v834 = vld [vmem:[%s831 + $0x8] sm:$0xf]
    %v835 = vld [vmem:[%s831 + $0xc] sm:$0xf]
    %v836 = vld [vmem:[%s831 + $0x10] sm:$0xf]
    %v837 = vld [vmem:[%s831 + $0x14] sm:$0xf]
    %v838 = vld [vmem:[%s831 + $0x18] sm:$0xf]
    %v839 = vld [vmem:[%s831 + $0x1c] sm:$0xf]
    %v840 = vld [vmem:[%s831 + $0x20] sm:$0xf]
    %v841 = vld [vmem:[%s831 + $0x24] sm:$0xf]
    %v842 = vld [vmem:[%s831 + $0x28] sm:$0xf]
    %v843 = vld [vmem:[%s831 + $0x2c] sm:$0xf]
    %v844 = vld [vmem:[%s831 + $0x30] sm:$0xf]
    %v845 = vld [vmem:[%s831 + $0x34] sm:$0xf]
    %v846 = vld [vmem:[%s831 + $0x38] sm:$0xf]
    %v847 = vld [vmem:[%s831 + $0x3c] sm:$0xf]
    %s848 = scalar_lea.vmem [#allocation7], 7
    %v849 = vld [vmem:[%s848] sm:$0x1]
    %v851 = vlaneseq
    %v852 = vshrl.u32 %v851, 7
    %v853 = vsub.s32 0, %v852
    %v854 = vrot.slane %v849, %v853
    %v872 = vunpack.c.l.b16 %v832
    %v873 = vunpack.c.l.b16 %v833
    %v874 = vunpack.c.l.b16 %v834
    %v875 = vunpack.c.l.b16 %v835
    %v876 = vunpack.c.l.b16 %v836
    %v877 = vunpack.c.l.b16 %v837
    %v878 = vunpack.c.l.b16 %v838
    %v879 = vunpack.c.l.b16 %v839
    %v880 = vunpack.c.l.b16 %v840
    %v881 = vunpack.c.l.b16 %v841
    %v882 = vunpack.c.l.b16 %v842
    %v883 = vunpack.c.l.b16 %v843
    %v884 = vunpack.c.l.b16 %v844
    %v885 = vunpack.c.l.b16 %v845
    %v886 = vunpack.c.l.b16 %v846
    %v887 = vunpack.c.l.b16 %v847
    %v888 = vpack.c.b16 %v873, %v872
    %v889 = vpack.c.b16 %v875, %v874
    %v890 = vpack.c.b16 %v877, %v876
    %v891 = vpack.c.b16 %v879, %v878
    %v892 = vpack.c.b16 %v881, %v880
    %v893 = vpack.c.b16 %v883, %v882
    %v894 = vpack.c.b16 %v885, %v884
    %v895 = vpack.c.b16 %v887, %v886
    %904 = vmatprep.subr.bf16.mxu0 0
    %905 = vmatpush1.bf16.msra.mxu0 %v888
    %906 = vmatprep.subr.bf16.mxu0 0
    %907 = vmatpush1.bf16.msra.mxu0 %v889
    %908 = vmatprep.subr.bf16.mxu0 0
    %909 = vmatpush1.bf16.msra.mxu0 %v890
    %910 = vmatprep.subr.bf16.mxu0 0
    %911 = vmatpush1.bf16.msra.mxu0 %v891
    %912 = vmatprep.subr.bf16.mxu0 0
    %913 = vmatpush1.bf16.msra.mxu0 %v892
    %914 = vmatprep.subr.bf16.mxu0 0
    %915 = vmatpush1.bf16.msra.mxu0 %v893
    %916 = vmatprep.subr.bf16.mxu0 0
    %917 = vmatpush1.bf16.msra.mxu0 %v894
    %918 = vmatprep.subr.bf16.mxu0 0
    %919 = vmatpush1.bf16.msra.mxu0 %v895
    %920 = vmatprep.subr.bf16.mxu0 0
    %921 = vmatpush1.bf16.msra.mxu0 0
    %922 = vmatprep.subr.bf16.mxu0 0
    %923 = vmatpush1.bf16.msra.mxu0 0
    %924 = vmatprep.subr.bf16.mxu0 0
    %925 = vmatpush1.bf16.msra.mxu0 0
    %926 = vmatprep.subr.bf16.mxu0 0
    %927 = vmatpush1.bf16.msra.mxu0 0
    %928 = vmatprep.subr.bf16.mxu0 0
    %929 = vmatpush1.bf16.msra.mxu0 0
    %930 = vmatprep.subr.bf16.mxu0 0
    %931 = vmatpush1.bf16.msra.mxu0 0
    %932 = vmatprep.subr.bf16.mxu0 0
    %933 = vmatpush1.bf16.msra.mxu0 0
    %934 = vmatprep.subr.bf16.mxu0 0
    %935 = vmatpush1.bf16.msra.mxu0 0
    %936 = vmatprep.mubr.bf16.mxu0 0
    %937 = vmatmul.mubr.bf16.gmra.mrb[0].mxu0 %v830
    %v938 = vpop.f32.mrb[0].mxu0
    %v939 = vadd.f32 %v854, %v938
    %v940 = vpop.f32.mrb[0].mxu0
    %v941 = vpop.f32.mrb[0].mxu0
    %v942 = vadd.f32 %v854, %v941
    %v943 = vpop.f32.mrb[0].mxu0
    %944 = vdwg.mxu0
    %v945 = vmax.f32 %v939, 0.0
    %v946 = vmax.f32 %v942, 0.0
    %v947 = vpack.c.bf16 %v946, %v945
    %s948 = scalar_lea.vmem [#allocation5], 512
    %v949 = vld [vmem:[%s948] sm:$0xf]
    %v950 = vld [vmem:[%s948 + $0x4] sm:$0xf]
    %v951 = vld [vmem:[%s948 + $0x8] sm:$0xf]
    %v952 = vld [vmem:[%s948 + $0xc] sm:$0xf]
    %v953 = vld [vmem:[%s948 + $0x10] sm:$0xf]
    %v954 = vld [vmem:[%s948 + $0x14] sm:$0xf]
    %v955 = vld [vmem:[%s948 + $0x18] sm:$0xf]
    %v956 = vld [vmem:[%s948 + $0x1c] sm:$0xf]
    %v957 = vld [vmem:[%s948 + $0x20] sm:$0xf]
    %v958 = vld [vmem:[%s948 + $0x24] sm:$0xf]
    %v959 = vld [vmem:[%s948 + $0x28] sm:$0xf]
    %v960 = vld [vmem:[%s948 + $0x2c] sm:$0xf]
    %v961 = vld [vmem:[%s948 + $0x30] sm:$0xf]
    %v962 = vld [vmem:[%s948 + $0x34] sm:$0xf]
    %v963 = vld [vmem:[%s948 + $0x38] sm:$0xf]
    %v964 = vld [vmem:[%s948 + $0x3c] sm:$0xf]
    %s965 = scalar_lea.vmem [#allocation7], 8
    %v966 = vld [vmem:[%s965] sm:$0x1]
    %v968 = vlaneseq
    %v969 = vshrl.u32 %v968, 7
    %v970 = vsub.s32 0, %v969
    %v971 = vrot.slane %v966, %v970
    %v989 = vunpack.c.l.b16 %v949
    %v990 = vunpack.c.l.b16 %v950
    %v991 = vunpack.c.l.b16 %v951
    %v992 = vunpack.c.l.b16 %v952
    %v993 = vunpack.c.l.b16 %v953
    %v994 = vunpack.c.l.b16 %v954
    %v995 = vunpack.c.l.b16 %v955
    %v996 = vunpack.c.l.b16 %v956
    %v997 = vunpack.c.l.b16 %v957
    %v998 = vunpack.c.l.b16 %v958
    %v999 = vunpack.c.l.b16 %v959
    %v1000 = vunpack.c.l.b16 %v960
    %v1001 = vunpack.c.l.b16 %v961
    %v1002 = vunpack.c.l.b16 %v962
    %v1003 = vunpack.c.l.b16 %v963
    %v1004 = vunpack.c.l.b16 %v964
    %v1005 = vpack.c.b16 %v990, %v989
    %v1006 = vpack.c.b16 %v992, %v991
    %v1007 = vpack.c.b16 %v994, %v993
    %v1008 = vpack.c.b16 %v996, %v995
    %v1009 = vpack.c.b16 %v998, %v997
    %v1010 = vpack.c.b16 %v1000, %v999
    %v1011 = vpack.c.b16 %v1002, %v1001
    %v1012 = vpack.c.b16 %v1004, %v1003
    %1021 = vmatprep.subr.bf16.mxu0 0
    %1022 = vmatpush1.bf16.msra.mxu0 %v1005
    %1023 = vmatprep.subr.bf16.mxu0 0
    %1024 = vmatpush1.bf16.msra.mxu0 %v1006
    %1025 = vmatprep.subr.bf16.mxu0 0
    %1026 = vmatpush1.bf16.msra.mxu0 %v1007
    %1027 = vmatprep.subr.bf16.mxu0 0
    %1028 = vmatpush1.bf16.msra.mxu0 %v1008
    %1029 = vmatprep.subr.bf16.mxu0 0
    %1030 = vmatpush1.bf16.msra.mxu0 %v1009
    %1031 = vmatprep.subr.bf16.mxu0 0
    %1032 = vmatpush1.bf16.msra.mxu0 %v1010
    %1033 = vmatprep.subr.bf16.mxu0 0
    %1034 = vmatpush1.bf16.msra.mxu0 %v1011
    %1035 = vmatprep.subr.bf16.mxu0 0
    %1036 = vmatpush1.bf16.msra.mxu0 %v1012
    %1037 = vmatprep.subr.bf16.mxu0 0
    %1038 = vmatpush1.bf16.msra.mxu0 0
    %1039 = vmatprep.subr.bf16.mxu0 0
    %1040 = vmatpush1.bf16.msra.mxu0 0
    %1041 = vmatprep.subr.bf16.mxu0 0
    %1042 = vmatpush1.bf16.msra.mxu0 0
    %1043 = vmatprep.subr.bf16.mxu0 0
    %1044 = vmatpush1.bf16.msra.mxu0 0
    %1045 = vmatprep.subr.bf16.mxu0 0
    %1046 = vmatpush1.bf16.msra.mxu0 0
    %1047 = vmatprep.subr.bf16.mxu0 0
    %1048 = vmatpush1.bf16.msra.mxu0 0
    %1049 = vmatprep.subr.bf16.mxu0 0
    %1050 = vmatpush1.bf16.msra.mxu0 0
    %1051 = vmatprep.subr.bf16.mxu0 0
    %1052 = vmatpush1.bf16.msra.mxu0 0
    %1053 = vmatprep.mubr.bf16.mxu0 0
    %1054 = vmatmul.mubr.bf16.gmra.mrb[0].mxu0 %v947
    %v1055 = vpop.f32.mrb[0].mxu0
    %v1056 = vadd.f32 %v971, %v1055
    %v1057 = vpop.f32.mrb[0].mxu0
    %v1058 = vpop.f32.mrb[0].mxu0
    %v1059 = vadd.f32 %v971, %v1058
    %v1060 = vpop.f32.mrb[0].mxu0
    %1061 = vdwg.mxu0
    %v1062 = vmax.f32 %v1056, 0.0
    %v1063 = vmax.f32 %v1059, 0.0
    %v1064 = vpack.c.bf16 %v1063, %v1062
    %s1065 = scalar_lea.vmem [#allocation5], 576
    %v1066 = vld [vmem:[%s1065] sm:$0xf]
    %v1067 = vld [vmem:[%s1065 + $0x4] sm:$0xf]
    %v1068 = vld [vmem:[%s1065 + $0x8] sm:$0xf]
    %v1069 = vld [vmem:[%s1065 + $0xc] sm:$0xf]
    %v1070 = vld [vmem:[%s1065 + $0x10] sm:$0xf]
    %v1071 = vld [vmem:[%s1065 + $0x14] sm:$0xf]
    %v1072 = vld [vmem:[%s1065 + $0x18] sm:$0xf]
    %v1073 = vld [vmem:[%s1065 + $0x1c] sm:$0xf]
    %v1074 = vld [vmem:[%s1065 + $0x20] sm:$0xf]
    %v1075 = vld [vmem:[%s1065 + $0x24] sm:$0xf]
    %v1076 = vld [vmem:[%s1065 + $0x28] sm:$0xf]
    %v1077 = vld [vmem:[%s1065 + $0x2c] sm:$0xf]
    %v1078 = vld [vmem:[%s1065 + $0x30] sm:$0xf]
    %v1079 = vld [vmem:[%s1065 + $0x34] sm:$0xf]
    %v1080 = vld [vmem:[%s1065 + $0x38] sm:$0xf]
    %v1081 = vld [vmem:[%s1065 + $0x3c] sm:$0xf]
    %s1082 = scalar_lea.vmem [#allocation7], 9
    %v1083 = vld [vmem:[%s1082] sm:$0x1]
    %v1085 = vlaneseq
    %v1086 = vshrl.u32 %v1085, 7
    %v1087 = vsub.s32 0, %v1086
    %v1088 = vrot.slane %v1083, %v1087
    %v1106 = vunpack.c.l.b16 %v1066
    %v1107 = vunpack.c.l.b16 %v1067
    %v1108 = vunpack.c.l.b16 %v1068
    %v1109 = vunpack.c.l.b16 %v1069
    %v1110 = vunpack.c.l.b16 %v1070
    %v1111 = vunpack.c.l.b16 %v1071
    %v1112 = vunpack.c.l.b16 %v1072
    %v1113 = vunpack.c.l.b16 %v1073
    %v1114 = vunpack.c.l.b16 %v1074
    %v1115 = vunpack.c.l.b16 %v1075
    %v1116 = vunpack.c.l.b16 %v1076
    %v1117 = vunpack.c.l.b16 %v1077
    %v1118 = vunpack.c.l.b16 %v1078
    %v1119 = vunpack.c.l.b16 %v1079
    %v1120 = vunpack.c.l.b16 %v1080
    %v1121 = vunpack.c.l.b16 %v1081
    %v1122 = vpack.c.b16 %v1107, %v1106
    %v1123 = vpack.c.b16 %v1109, %v1108
    %v1124 = vpack.c.b16 %v1111, %v1110
    %v1125 = vpack.c.b16 %v1113, %v1112
    %v1126 = vpack.c.b16 %v1115, %v1114
    %v1127 = vpack.c.b16 %v1117, %v1116
    %v1128 = vpack.c.b16 %v1119, %v1118
    %v1129 = vpack.c.b16 %v1121, %v1120
    %1138 = vmatprep.subr.bf16.mxu0 0
    %1139 = vmatpush1.bf16.msra.mxu0 %v1122
    %1140 = vmatprep.subr.bf16.mxu0 0
    %1141 = vmatpush1.bf16.msra.mxu0 %v1123
    %1142 = vmatprep.subr.bf16.mxu0 0
    %1143 = vmatpush1.bf16.msra.mxu0 %v1124
    %1144 = vmatprep.subr.bf16.mxu0 0
    %1145 = vmatpush1.bf16.msra.mxu0 %v1125
    %1146 = vmatprep.subr.bf16.mxu0 0
    %1147 = vmatpush1.bf16.msra.mxu0 %v1126
    %1148 = vmatprep.subr.bf16.mxu0 0
    %1149 = vmatpush1.bf16.msra.mxu0 %v1127
    %1150 = vmatprep.subr.bf16.mxu0 0
    %1151 = vmatpush1.bf16.msra.mxu0 %v1128
    %1152 = vmatprep.subr.bf16.mxu0 0
    %1153 = vmatpush1.bf16.msra.mxu0 %v1129
    %1154 = vmatprep.subr.bf16.mxu0 0
    %1155 = vmatpush1.bf16.msra.mxu0 0
    %1156 = vmatprep.subr.bf16.mxu0 0
    %1157 = vmatpush1.bf16.msra.mxu0 0
    %1158 = vmatprep.subr.bf16.mxu0 0
    %1159 = vmatpush1.bf16.msra.mxu0 0
    %1160 = vmatprep.subr.bf16.mxu0 0
    %1161 = vmatpush1.bf16.msra.mxu0 0
    %1162 = vmatprep.subr.bf16.mxu0 0
    %1163 = vmatpush1.bf16.msra.mxu0 0
    %1164 = vmatprep.subr.bf16.mxu0 0
    %1165 = vmatpush1.bf16.msra.mxu0 0
    %1166 = vmatprep.subr.bf16.mxu0 0
    %1167 = vmatpush1.bf16.msra.mxu0 0
    %1168 = vmatprep.subr.bf16.mxu0 0
    %1169 = vmatpush1.bf16.msra.mxu0 0
    %1170 = vmatprep.mubr.bf16.mxu0 0
    %1171 = vmatmul.mubr.bf16.gmra.mrb[0].mxu0 %v1064
    %v1172 = vpop.f32.mrb[0].mxu0
    %v1173 = vadd.f32 %v1088, %v1172
    %v1174 = vpop.f32.mrb[0].mxu0
    %v1175 = vpop.f32.mrb[0].mxu0
    %v1176 = vadd.f32 %v1088, %v1175
    %v1177 = vpop.f32.mrb[0].mxu0
    %1178 = vdwg.mxu0
    %1181 = vrot.lane.b32.xlu0 %v590, 64
    %v1182 = vpop.permute.xlu0 %1181
    %1183 = vrot.lane.b32.xlu0 %v593, 64
    %v1184 = vpop.permute.xlu0 %1183
    %vm1187 = vcmask 523264
    %v1188 = vsel %vm1187, %v1173, %v1182
    %v1189 = vsel %vm1187, %v1176, %v1184
    %1190 = vst [vmem:[#allocation8] sm:$0xff] %v1188
    %1191 = vst [vmem:[#allocation8 + $0x8] sm:$0xff] %v1189
    // Predicated region
    $region26: #{tpu_custom_call.1} parent=1 // pred_check
      _
    $region27: #{tpu_custom_call.1} parent=1 // pred_check_branch
      %1193 = sbr.rel (0) target = $region29
    $region28: #{tpu_custom_call.1} parent=1 // pred_region
      %s1195 = ssub.s32 256, 256
      %1196 = vsyncadd [#allocation4], %s1195
      %s1197 = sshll.u32 [#allocation8], 4
      %s1198 = int_to_ptr.vmem [resolvable:$true] %s1197
      %1203 = dma.vmem_to_hbm [thread:$0]  %s1198, 256, %s3, [#allocation4], 128, 128, 8
    $region29: #{tpu_custom_call.1} parent=1 // pred_fallthru
      _
    // Predicated region
    $region30: #{tpu_custom_call.1} parent=1 // pred_check
      _
    $region31: #{tpu_custom_call.1} parent=1 // pred_check_branch
      %1205 = sbr.rel (0) target = $region33
    $region32: #{tpu_custom_call.1} parent=1 // pred_region
      %1206 = dma.done [#allocation4], 256
    $region33: #{tpu_custom_call.1} parent=1 // pred_fallthru
      _
    %1207 = vsyncpa [#allocation3], 1
    %1208 = vsyncpa [#allocation6], 1
    %1209 = vsyncpa [#allocation4], 1

</llo_original>
